<compile_context>
chip_gen: v5e
topology: v5e:2x2
jax: 0.10.0
libtpu: 0.0.40
codegen_flags: <defaults>
</compile_context>

<pallas_src>
import functools

import jax
import jax.numpy as jnp
from jax import lax
from jax.experimental import pallas as pl
from jax.experimental.pallas import tpu as pltpu


def _likelihood_grid_kernel(uv_ref, prm_ref, out_ref, *, neg_inv_sigma,
                            gaussian_weight, hyperbolic_weight, squared,
                            normalize):
    # Constant unit-grid coordinates, lane-dense: (1, N*N) each.
    u = uv_ref[0:1, :]          # i / (N - 1)
    v = uv_ref[1:2, :]          # j / (N - 1)

    # Packed per-batch scalars, (b_tile, 1) columns -> broadcast along lanes.
    room_x = prm_ref[:, 0:1]
    room_y = prm_ref[:, 1:2]
    sx = prm_ref[:, 2:3]
    sy = prm_ref[:, 3:4]

    # Grid-point coordinates: linspace(0, room_dim, N) per axis.
    px = room_x * u             # (b_tile, N*N)
    py = room_y * v

    def _sqrt(x):
        # sqrt(x) = x * rsqrt(x): one EUP push + one VPU mul instead of a full
        # sqrt lowering; epsilon keeps x == 0 finite (0 * rsqrt(eps) == 0).
        return x * lax.rsqrt(x + 1e-30)

    grid = None

    if gaussian_weight > 0.0:
        dx = px - sx
        dy = py - sy
        d2 = dx * dx + dy * dy
        metric = d2 if squared else _sqrt(d2)
        grid = gaussian_weight * jnp.exp(metric * neg_inv_sigma)

    if hyperbolic_weight > 0.0:
        m0x = prm_ref[:, 4:5]
        m0y = prm_ref[:, 5:6]
        m1x = prm_ref[:, 6:7]
        m1y = prm_ref[:, 7:8]
        d0 = _sqrt((px - m0x) ** 2 + (py - m0y) ** 2)
        d1 = _sqrt((px - m1x) ** 2 + (py - m1y) ** 2)
        ds0 = _sqrt((sx - m0x) ** 2 + (sy - m0y) ** 2)     # (b_tile, 1)
        ds1 = _sqrt((sx - m1x) ** 2 + (sy - m1y) ** 2)
        delta = jnp.abs((d0 - d1) - (ds0 - ds1))
        metric = delta * delta if squared else delta
        hyp = hyperbolic_weight * jnp.exp(metric * neg_inv_sigma)
        grid = hyp if grid is None else grid + hyp

    if normalize:
        # grid >= 0 (weighted sum of exps), so no abs() pass is needed.
        mx = jnp.max(grid, axis=1, keepdims=True)            # (b_tile, 1)
        mn = jnp.min(grid, axis=1, keepdims=True)
        denom = mx - mn + 1e-12                               # eps guard
        inv = pl.reciprocal(denom, approx=True)
        inv = inv * (2.0 - denom * inv)                       # one Newton step
        grid = (grid - mn) * inv

    out_ref[...] = grid.astype(out_ref.dtype)


def _num_tensorcores():
    """Best-effort TC-per-device count (v7x has 2; v5e/v6e have 1)."""
    try:
        dev = jax.devices()[0]
        if dev.platform != "tpu":
            return 1
        kind = (getattr(dev, "device_kind", "") or "").lower()
        return 2 if "v7" in kind else 1
    except Exception:
        return 1


def _choose_tiling(batch, num_tc, max_tile=256):
    round8 = lambda x: max(8, ((x + 7) // 8) * 8)
    if num_tc <= 1 or batch < 16:
        # Single TC (or tiny batch): the grid is a serial loop, so never split
        # unless the batch exceeds the tile cap.
        b_tile = min(max_tile, round8(batch))
        n_steps = max(1, -(-batch // b_tile))
    else:
        # Multi-TC: balanced step count (multiple of num_tc) so both cores get
        # equal work.
        n_steps = max(num_tc, -(-batch // max_tile))
        n_steps = -(-n_steps // num_tc) * num_tc
        b_tile = min(max_tile, round8(-(-batch // n_steps)))
    return b_tile, n_steps


def likelihood_grid(room_dims, source_coordinates, mic_coordinates=None, *,
                    sigma=1.0, n_points_per_axis=25, hyperbolic_weight=0.5,
                    gaussian_weight=0.5, normalize=True, squared=False):
    """JAX/Pallas equivalent of LikelihoodGrid.forward."""
    batch = room_dims.shape[0]
    n = int(n_points_per_axis)
    nn = n * n

    # Static branch, mirrors `if mic_coordinates.shape[1] == 2:` in torch.
    if mic_coordinates is not None and mic_coordinates.shape[1] == 2:
        gw, hw = float(gaussian_weight), float(hyperbolic_weight)
    else:
        gw, hw = 1.0, 0.0
    if gw <= 0.0 and hw <= 0.0:
        raise ValueError("at least one of gaussian/hyperbolic weight must be > 0")
    use_hyp = hw > 0.0
    if use_hyp and mic_coordinates is None:
        raise ValueError("mic_coordinates required for the hyperbolic grid")

    num_tc = _num_tensorcores()
    b_tile, n_steps = _choose_tiling(batch, num_tc)
    b_pad = b_tile * n_steps

    # Pack all per-batch scalars into one (B, 8) array -> one input DMA
    # window per step: [room_x, room_y, src_x, src_y, m0x, m0y, m1x, m1y].
    room = room_dims.astype(jnp.float32).reshape(batch, -1)[:, :2]
    src = source_coordinates.astype(jnp.float32).reshape(batch, -1)[:, :2]
    if use_hyp:
        mic = mic_coordinates.astype(jnp.float32)
        mic_xy = jnp.concatenate([mic[:, 0, :2], mic[:, 1, :2]], axis=1)
    else:
        mic_xy = jnp.zeros((batch, 4), jnp.float32)
    params = jnp.concatenate([room, src, mic_xy], axis=1)        # (B, 8)
    params = jnp.pad(params, ((0, b_pad - batch), (0, 0)))

    # Constant unit grid coordinates (row-major flatten of the N x N grid).
    step = 0.0 if n <= 1 else 1.0 / float(n - 1)
    ramp = jnp.arange(nn, dtype=jnp.int32)
    u = (ramp // n).astype(jnp.float32) * step
    v = (ramp % n).astype(jnp.float32) * step
    uv = jnp.stack([u, v])                                       # (2, N*N)

    kernel = functools.partial(
        _likelihood_grid_kernel,
        neg_inv_sigma=-1.0 / float(sigma),
        gaussian_weight=gw,
        hyperbolic_weight=hw,
        squared=bool(squared),
        normalize=bool(normalize),
    )

    # Advisory: this call is transcendental-heavy (sqrt/exp), light on bytes.
    cost = pl.CostEstimate(
        flops=int(25 * b_pad * nn),
        transcendentals=int(5 * b_pad * nn),
        bytes_accessed=int(4 * b_pad * nn + 4 * b_pad * 8 + 4 * 2 * nn),
    )

    out = pl.pallas_call(
        kernel,
        out_shape=jax.ShapeDtypeStruct((b_pad, nn), jnp.float32),
        grid=(n_steps,),
        in_specs=[
            pl.BlockSpec((2, nn), lambda i: (0, 0)),             # constant uv
            pl.BlockSpec((b_tile, 8), lambda i: (i, 0)),         # packed params
        ],
        out_specs=pl.BlockSpec((b_tile, nn), lambda i: (i, 0)),
        compiler_params=pltpu.CompilerParams(
            dimension_semantics=("parallel",),
            vmem_limit_bytes=32 << 20,
        ),
        cost_estimate=cost,
    )(uv, params)

    return out[:batch].reshape(batch, n, n)


if __name__ == "__main__":
    key = jax.random.PRNGKey(0)
    k1, k2, k3 = jax.random.split(key, 3)

    batch = 2
    n_points = 16

    # Room dims (x, y) in meters, roughly 4m - 8m rooms.
    room_dims = 4.0 + 4.0 * jax.random.uniform(k1, (batch, 2), jnp.float32)
    # Source somewhere inside the room (x, y, z).
    src_xy = room_dims * jax.random.uniform(k2, (batch, 2), jnp.float32)
    source_coordinates = jnp.concatenate(
        [src_xy, jnp.full((batch, 1), 1.5, jnp.float32)], axis=1)
    # Two microphones per batch element (x, y, z) -> hyperbolic branch active.
    mic_xy = room_dims[:, None, :] * jax.random.uniform(
        k3, (batch, 2, 2), jnp.float32)
    mic_coordinates = jnp.concatenate(
        [mic_xy, jnp.full((batch, 2, 1), 1.0, jnp.float32)], axis=2)

    grids = likelihood_grid(
        room_dims, source_coordinates, mic_coordinates,
        sigma=1.0, n_points_per_axis=n_points,
        hyperbolic_weight=0.5, gaussian_weight=0.5,
        normalize=True, squared=False)
    grids = jax.block_until_ready(grids)
    assert grids.shape == (batch, n_points, n_points)
    assert bool(jnp.all(jnp.isfinite(grids)))
    assert bool(jnp.all(grids >= -1e-6)) and bool(jnp.all(grids <= 1.0 + 1e-6))

    # Gaussian-only path (mic count != 2 -> gaussian_weight forced to 1).
    mic3 = jnp.concatenate([mic_coordinates, mic_coordinates[:, :1]], axis=1)
    grids_g = likelihood_grid(
        room_dims, source_coordinates, mic3,
        sigma=1.0, n_points_per_axis=n_points,
        hyperbolic_weight=0.5, gaussian_weight=0.5,
        normalize=True, squared=False)
    grids_g = jax.block_until_ready(grids_g)
    assert grids_g.shape == (batch, n_points, n_points)
    assert bool(jnp.all(jnp.isfinite(grids_g)))

    print("KERNEL_OK")
</pallas_src>

<mosaic_0001>
module attributes {stable_mosaic.version = 11 : i64} {
  func.func @_likelihood_grid_kernel(%arg0: i32, %arg1: memref<2x256xf32, #tpu.memory_space<vmem>>, %arg2: memref<8x8xf32, #tpu.memory_space<vmem>>, %arg3: memref<8x256xf32, #tpu.memory_space<vmem>>) attributes {dimension_semantics = [#tpu.dimension_semantics<parallel>], iteration_bounds = array<i64: 1>, scalar_prefetch = 0 : i64, scratch_operands = 0 : i64, tpu.core_type = #tpu.core_type<tc>, window_params = [{pipeline_mode = #tpu.pipeline_mode<synchronous>, transform_indices = @transform_0, window_bounds = array<i64: 2, 256>}, {transform_indices = @transform_1, window_bounds = array<i64: 8, 8>}, {transform_indices = @transform_2, window_bounds = array<i64: 8, 256>}]} {
    %c0 = arith.constant 0 : index
    %c0_0 = arith.constant 0 : index
    %0 = vector.load %arg1[%c0, %c0_0] : memref<2x256xf32, #tpu.memory_space<vmem>>, vector<1x256xf32>
    %c1 = arith.constant 1 : index
    %c0_1 = arith.constant 0 : index
    %1 = vector.load %arg1[%c1, %c0_1] : memref<2x256xf32, #tpu.memory_space<vmem>>, vector<1x256xf32>
    %c0_2 = arith.constant 0 : index
    %c0_3 = arith.constant 0 : index
    %2 = vector.load %arg2[%c0_2, %c0_3] : memref<8x8xf32, #tpu.memory_space<vmem>>, vector<8x1xf32>
    %c0_4 = arith.constant 0 : index
    %c1_5 = arith.constant 1 : index
    %3 = vector.load %arg2[%c0_4, %c1_5] : memref<8x8xf32, #tpu.memory_space<vmem>>, vector<8x1xf32>
    %c0_6 = arith.constant 0 : index
    %c2 = arith.constant 2 : index
    %4 = vector.load %arg2[%c0_6, %c2] : memref<8x8xf32, #tpu.memory_space<vmem>>, vector<8x1xf32>
    %c0_7 = arith.constant 0 : index
    %c3 = arith.constant 3 : index
    %5 = vector.load %arg2[%c0_7, %c3] : memref<8x8xf32, #tpu.memory_space<vmem>>, vector<8x1xf32>
    %6 = vector.broadcast %2 : vector<8x1xf32> to vector<8x256xf32>
    %7 = vector.broadcast %0 : vector<1x256xf32> to vector<8x256xf32>
    %8 = arith.mulf %6, %7 : vector<8x256xf32>
    %9 = vector.broadcast %3 : vector<8x1xf32> to vector<8x256xf32>
    %10 = vector.broadcast %1 : vector<1x256xf32> to vector<8x256xf32>
    %11 = arith.mulf %9, %10 : vector<8x256xf32>
    %12 = vector.broadcast %4 : vector<8x1xf32> to vector<8x256xf32>
    %13 = arith.subf %8, %12 : vector<8x256xf32>
    %14 = vector.broadcast %5 : vector<8x1xf32> to vector<8x256xf32>
    %15 = arith.subf %11, %14 : vector<8x256xf32>
    %16 = arith.mulf %13, %13 : vector<8x256xf32>
    %17 = arith.mulf %15, %15 : vector<8x256xf32>
    %18 = arith.addf %16, %17 : vector<8x256xf32>
    %cst = arith.constant 1.000000e-30 : f32
    %19 = vector.broadcast %cst : f32 to vector<8x256xf32>
    %20 = arith.addf %18, %19 : vector<8x256xf32>
    %21 = math.rsqrt %20 : vector<8x256xf32>
    %22 = arith.mulf %18, %21 : vector<8x256xf32>
    %cst_8 = arith.constant -1.000000e+00 : f32
    %23 = vector.broadcast %cst_8 : f32 to vector<8x256xf32>
    %24 = arith.mulf %22, %23 : vector<8x256xf32>
    %25 = math.exp %24 : vector<8x256xf32>
    %cst_9 = arith.constant 5.000000e-01 : f32
    %26 = vector.broadcast %cst_9 : f32 to vector<8x256xf32>
    %27 = arith.mulf %26, %25 : vector<8x256xf32>
    %c0_10 = arith.constant 0 : index
    %c4 = arith.constant 4 : index
    %28 = vector.load %arg2[%c0_10, %c4] : memref<8x8xf32, #tpu.memory_space<vmem>>, vector<8x1xf32>
    %c0_11 = arith.constant 0 : index
    %c5 = arith.constant 5 : index
    %29 = vector.load %arg2[%c0_11, %c5] : memref<8x8xf32, #tpu.memory_space<vmem>>, vector<8x1xf32>
    %c0_12 = arith.constant 0 : index
    %c6 = arith.constant 6 : index
    %30 = vector.load %arg2[%c0_12, %c6] : memref<8x8xf32, #tpu.memory_space<vmem>>, vector<8x1xf32>
    %c0_13 = arith.constant 0 : index
    %c7 = arith.constant 7 : index
    %31 = vector.load %arg2[%c0_13, %c7] : memref<8x8xf32, #tpu.memory_space<vmem>>, vector<8x1xf32>
    %32 = vector.broadcast %28 : vector<8x1xf32> to vector<8x256xf32>
    %33 = arith.subf %8, %32 : vector<8x256xf32>
    %34 = arith.mulf %33, %33 : vector<8x256xf32>
    %35 = vector.broadcast %29 : vector<8x1xf32> to vector<8x256xf32>
    %36 = arith.subf %11, %35 : vector<8x256xf32>
    %37 = arith.mulf %36, %36 : vector<8x256xf32>
    %38 = arith.addf %34, %37 : vector<8x256xf32>
    %cst_14 = arith.constant 1.000000e-30 : f32
    %39 = vector.broadcast %cst_14 : f32 to vector<8x256xf32>
    %40 = arith.addf %38, %39 : vector<8x256xf32>
    %41 = math.rsqrt %40 : vector<8x256xf32>
    %42 = arith.mulf %38, %41 : vector<8x256xf32>
    %43 = vector.broadcast %30 : vector<8x1xf32> to vector<8x256xf32>
    %44 = arith.subf %8, %43 : vector<8x256xf32>
    %45 = arith.mulf %44, %44 : vector<8x256xf32>
    %46 = vector.broadcast %31 : vector<8x1xf32> to vector<8x256xf32>
    %47 = arith.subf %11, %46 : vector<8x256xf32>
    %48 = arith.mulf %47, %47 : vector<8x256xf32>
    %49 = arith.addf %45, %48 : vector<8x256xf32>
    %cst_15 = arith.constant 1.000000e-30 : f32
    %50 = vector.broadcast %cst_15 : f32 to vector<8x256xf32>
    %51 = arith.addf %49, %50 : vector<8x256xf32>
    %52 = math.rsqrt %51 : vector<8x256xf32>
    %53 = arith.mulf %49, %52 : vector<8x256xf32>
    %54 = arith.subf %4, %28 : vector<8x1xf32>
    %55 = arith.mulf %54, %54 : vector<8x1xf32>
    %56 = arith.subf %5, %29 : vector<8x1xf32>
    %57 = arith.mulf %56, %56 : vector<8x1xf32>
    %58 = arith.addf %55, %57 : vector<8x1xf32>
    %cst_16 = arith.constant 1.000000e-30 : f32
    %59 = vector.broadcast %cst_16 : f32 to vector<8x1xf32>
    %60 = arith.addf %58, %59 : vector<8x1xf32>
    %61 = math.rsqrt %60 : vector<8x1xf32>
    %62 = arith.mulf %58, %61 : vector<8x1xf32>
    %63 = arith.subf %4, %30 : vector<8x1xf32>
    %64 = arith.mulf %63, %63 : vector<8x1xf32>
    %65 = arith.subf %5, %31 : vector<8x1xf32>
    %66 = arith.mulf %65, %65 : vector<8x1xf32>
    %67 = arith.addf %64, %66 : vector<8x1xf32>
    %cst_17 = arith.constant 1.000000e-30 : f32
    %68 = vector.broadcast %cst_17 : f32 to vector<8x1xf32>
    %69 = arith.addf %67, %68 : vector<8x1xf32>
    %70 = math.rsqrt %69 : vector<8x1xf32>
    %71 = arith.mulf %67, %70 : vector<8x1xf32>
    %72 = arith.subf %42, %53 : vector<8x256xf32>
    %73 = arith.subf %62, %71 : vector<8x1xf32>
    %74 = vector.broadcast %73 : vector<8x1xf32> to vector<8x256xf32>
    %75 = arith.subf %72, %74 : vector<8x256xf32>
    %76 = math.absf %75 : vector<8x256xf32>
    %cst_18 = arith.constant -1.000000e+00 : f32
    %77 = vector.broadcast %cst_18 : f32 to vector<8x256xf32>
    %78 = arith.mulf %76, %77 : vector<8x256xf32>
    %79 = math.exp %78 : vector<8x256xf32>
    %cst_19 = arith.constant 5.000000e-01 : f32
    %80 = vector.broadcast %cst_19 : f32 to vector<8x256xf32>
    %81 = arith.mulf %80, %79 : vector<8x256xf32>
    %82 = arith.addf %27, %81 : vector<8x256xf32>
    %cst_20 = arith.constant dense<0xFF800000> : vector<8xf32>
    %83 = vector.multi_reduction <maximumf>, %82, %cst_20 [1] : vector<8x256xf32> to vector<8xf32>
    %84 = vector.shape_cast %83 : vector<8xf32> to vector<8x1xf32>
    %cst_21 = arith.constant dense<0x7F800000> : vector<8xf32>
    %85 = vector.multi_reduction <minimumf>, %82, %cst_21 [1] : vector<8x256xf32> to vector<8xf32>
    %86 = vector.shape_cast %85 : vector<8xf32> to vector<8x1xf32>
    %87 = arith.subf %84, %86 : vector<8x1xf32>
    %cst_22 = arith.constant 9.99999996E-13 : f32
    %88 = vector.broadcast %cst_22 : f32 to vector<8x1xf32>
    %89 = arith.addf %87, %88 : vector<8x1xf32>
    %90 = tpu.reciprocal %89 {approx = true} : vector<8x1xf32> -> vector<8x1xf32>
    %91 = arith.mulf %89, %90 : vector<8x1xf32>
    %cst_23 = arith.constant 2.000000e+00 : f32
    %92 = vector.broadcast %cst_23 : f32 to vector<8x1xf32>
    %93 = arith.subf %92, %91 : vector<8x1xf32>
    %94 = arith.mulf %90, %93 : vector<8x1xf32>
    %95 = vector.broadcast %86 : vector<8x1xf32> to vector<8x256xf32>
    %96 = arith.subf %82, %95 : vector<8x256xf32>
    %97 = vector.broadcast %94 : vector<8x1xf32> to vector<8x256xf32>
    %98 = arith.mulf %96, %97 : vector<8x256xf32>
    %c0_24 = arith.constant 0 : index
    %c0_25 = arith.constant 0 : index
    %99 = vector.load %arg3[%c0_24, %c0_25] : memref<8x256xf32, #tpu.memory_space<vmem>>, vector<8x256xf32>
    tpu.vector_store %arg3[%c0_24, %c0_25], %98 {strides = array<i32>} : memref<8x256xf32, #tpu.memory_space<vmem>>, vector<8x256xf32>,
    return
  }
  func.func @transform_0(%arg0: i32) -> (i32, i32) {
    %c0_i32 = arith.constant 0 : i32
    %c0_i32_0 = arith.constant 0 : i32
    %c0_i32_1 = arith.constant 0 : i32
    return %c0_i32, %c0_i32_0 : i32, i32
  }
  func.func @transform_1(%arg0: i32) -> (i32, i32) {
    %c0_i32 = arith.constant 0 : i32
    %c0_i32_0 = arith.constant 0 : i32
    return %arg0, %c0_i32 : i32, i32
  }
  func.func @transform_2(%arg0: i32) -> (i32, i32) {
    %c0_i32 = arith.constant 0 : i32
    %c0_i32_0 = arith.constant 0 : i32
    return %arg0, %c0_i32 : i32, i32
  }
}

</mosaic_0001>

<llo_original>
// kernel: tpu_custom_call.1
$region0: #{tpu_custom_call.1}
  #allocation0 [shape = 'u32[]', space=smem, size = 0x4, offset = 0x4, fixed_abs, tag = 'smem constant byte address 0x4 - core index']
  #allocation1 [shape = 'u32[72,128]{1,0:T(1,128)}', space=vmem, size = 0x9000, scoped, tag = 'internal scratch']
  %s0 = inlined_call_operand.hbm [shape: f32[2,256], index: 0, kind: input, shape index: {}]
  %s1 = inlined_call_operand.hbm [shape: f32[8,8], index: 1, kind: input, shape index: {}]
  %s2 = inlined_call_operand.hbm [shape: f32[8,256], index: 2, kind: output, shape index: {}]
  %s3 = sld [smem:[#allocation0]]
  $region26: #{tpu_custom_call.1} parent=0
    _
  %s5 = ssub.s32 1, %s3
  %s6 = scalar_select 0, %s5, %s3
  $region1: #{tpu_custom_call.1} parent=0
    #allocation2 [shape = 'u8[2048]{0}', space=vmem, size = 0x800, scoped, tag = 'input window, operand 0, single buffered']
    #allocation3 [shape = 's32[1]{0}', space=sflag, size = 0x4, scoped, tag = 'scoped memory for tpu_custom_call.1']
    #allocation4 [shape = 's32[1]{0}', space=sflag, size = 0x4, scoped, tag = 'scoped memory for tpu_custom_call.1']
    #allocation5 [shape = 'u8[4096]{0}', space=vmem, size = 0x1000, scoped, tag = 'input window, operand 1, single buffered']
    #allocation6 [shape = 's32[1]{0}', space=sflag, size = 0x4, scoped, tag = 'scoped memory for tpu_custom_call.1']
    #allocation7 [shape = 'u8[8192]{0}', space=vmem, size = 0x2000, scoped, tag = 'output window, operand 0, single buffered']
    %7 = vsyncpa [#allocation3], 0
    %8 = vsyncpa [#allocation6], 0
    %9 = vsyncpa [#allocation4], 0
    // Predicated region
    $region2: #{tpu_custom_call.1} parent=1 // pred_check
      _
    $region3: #{tpu_custom_call.1} parent=1 // pred_check_branch
      %11 = sbr.rel (0) target = $region5
    $region4: #{tpu_custom_call.1} parent=1 // pred_region
      %13 = vsyncadd [#allocation3], 0
      %s15 = sshll.u32 %s0, 4
      %s16 = int_to_ptr.hbm [resolvable:$true] %s15
      %s17 = sshll.u32 [#allocation2], 4
      %s18 = int_to_ptr.vmem [resolvable:$true] %s17
      %20 = dma.hbm_to_vmem [thread:$0]  %s16, 64, %s18, [#allocation3]
    $region5: #{tpu_custom_call.1} parent=1 // pred_fallthru
      _
    // Predicated region
    $region6: #{tpu_custom_call.1} parent=1 // pred_check
      _
    $region7: #{tpu_custom_call.1} parent=1 // pred_check_branch
      %22 = sbr.rel (0) target = $region9
    $region8: #{tpu_custom_call.1} parent=1 // pred_region
      %24 = vsyncadd [#allocation6], 0
      %s26 = sshll.u32 %s1, 4
      %s27 = int_to_ptr.hbm [resolvable:$true] %s26
      %s28 = sshll.u32 [#allocation5], 4
      %s29 = int_to_ptr.vmem [resolvable:$true] %s28
      %31 = dma.hbm_to_vmem [thread:$0]  %s27, 128, %s29, [#allocation6]
    $region9: #{tpu_custom_call.1} parent=1 // pred_fallthru
      _
    // Predicated region
    $region10: #{tpu_custom_call.1} parent=1 // pred_check
      _
    $region11: #{tpu_custom_call.1} parent=1 // pred_check_branch
      %33 = sbr.rel (0) target = $region13
    $region12: #{tpu_custom_call.1} parent=1 // pred_region
      %35 = dma.done [#allocation3], 64
    $region13: #{tpu_custom_call.1} parent=1 // pred_fallthru
      _
    // Predicated region
    $region14: #{tpu_custom_call.1} parent=1 // pred_check
      _
    $region15: #{tpu_custom_call.1} parent=1 // pred_check_branch
      %37 = sbr.rel (0) target = $region17
    $region16: #{tpu_custom_call.1} parent=1 // pred_region
      %39 = dma.done [#allocation6], 128
    $region17: #{tpu_custom_call.1} parent=1 // pred_fallthru
      _
    %v40 = vld [vmem:[#allocation2] ss:$2 sm:$0x3]
    %s41 = scalar_lea.vmem [#allocation2], 1
    %v42 = vld [vmem:[%s41] ss:$2 sm:$0x3]
    %v43 = vld [vmem:[#allocation5] sm:$0xff]
    %45 = vset.pattern.permute.xlu0 0
    %46 = vperm.xlu0 %45, %v43
    %v47 = vpop.permute.xlu0 %46
    %v50 = vperm.slane %v40, 0
    %v51 = vperm.slane %v40, 1
    %v54 = vmul.f32 %v47, %v50
    %v55 = vmul.f32 %v47, %v51
    %56 = vset.pattern.permute.xlu0 1
    %57 = vperm.xlu0 %56, %v43
    %v58 = vpop.permute.xlu0 %57
    %v61 = vperm.slane %v42, 0
    %v62 = vperm.slane %v42, 1
    %v65 = vmul.f32 %v58, %v61
    %v66 = vmul.f32 %v58, %v62
    %67 = vset.pattern.permute.xlu0 2
    %68 = vperm.xlu0 %67, %v43
    %v69 = vpop.permute.xlu0 %68
    %v71 = vsub.f32 %v54, %v69
    %v72 = vsub.f32 %v55, %v69
    %73 = vset.pattern.permute.xlu0 3
    %74 = vperm.xlu0 %73, %v43
    %v75 = vpop.permute.xlu0 %74
    %v77 = vsub.f32 %v65, %v75
    %v78 = vsub.f32 %v66, %v75
    %v79 = vmul.f32 %v71, %v71
    %v80 = vmul.f32 %v72, %v72
    %v81 = vmul.f32 %v77, %v77
    %v82 = vmul.f32 %v78, %v78
    %v83 = vadd.f32 %v79, %v81
    %v84 = vadd.f32 %v80, %v82
    %v85 = vadd.f32 %v83, 1e-30
    %v86 = vadd.f32 %v84, 1e-30
    %v87 = vrsqrt.pop %v85
    %v88 = vmul.f32 %v87, %v85
    %v89 = vmul.f32 %v88, %v87
    %v90 = vmul.f32 0.5, %v89
    %v91 = vsub.f32 1.5, %v90
    %v92 = vmul.f32 %v87, %v91
    %vm93 = vweird.f32 %v85
    %vm94 = vweird.f32 %v87
    %vm95 = vmor %vm93, %vm94
    %v96 = vsel %vm95, %v87, %v92
    %v97 = vrsqrt.pop %v86
    %v98 = vmul.f32 %v97, %v86
    %v99 = vmul.f32 %v98, %v97
    %v100 = vmul.f32 0.5, %v99
    %v101 = vsub.f32 1.5, %v100
    %v102 = vmul.f32 %v97, %v101
    %vm103 = vweird.f32 %v86
    %vm104 = vweird.f32 %v97
    %vm105 = vmor %vm103, %vm104
    %v106 = vsel %vm105, %v97, %v102
    %v107 = vmul.f32 %v83, %v96
    %v108 = vmul.f32 %v84, %v106
    %v109 = vmul.f32 %v107, -1.0
    %v110 = vmul.f32 %v108, -1.0
    %v111 = vmul.f32 %v109, 1.442695
    %v112 = vpow.pop %v111
    %v113 = vmul.f32 %v110, 1.442695
    %v114 = vpow.pop %v113
    %v115 = vmul.f32 %v112, 0.5
    %v116 = vmul.f32 %v114, 0.5
    %117 = vset.pattern.permute.xlu0 4
    %118 = vperm.xlu0 %117, %v43
    %v119 = vpop.permute.xlu0 %118
    %v121 = vsub.f32 %v54, %v119
    %v122 = vsub.f32 %v55, %v119
    %v123 = vmul.f32 %v121, %v121
    %v124 = vmul.f32 %v122, %v122
    %125 = vset.pattern.permute.xlu0 5
    %126 = vperm.xlu0 %125, %v43
    %v127 = vpop.permute.xlu0 %126
    %v129 = vsub.f32 %v65, %v127
    %v130 = vsub.f32 %v66, %v127
    %v131 = vmul.f32 %v129, %v129
    %v132 = vmul.f32 %v130, %v130
    %v133 = vadd.f32 %v123, %v131
    %v134 = vadd.f32 %v124, %v132
    %v135 = vadd.f32 %v133, 1e-30
    %v136 = vadd.f32 %v134, 1e-30
    %v137 = vrsqrt.pop %v135
    %v138 = vmul.f32 %v137, %v135
    %v139 = vmul.f32 %v138, %v137
    %v140 = vmul.f32 0.5, %v139
    %v141 = vsub.f32 1.5, %v140
    %v142 = vmul.f32 %v137, %v141
    %vm143 = vweird.f32 %v135
    %vm144 = vweird.f32 %v137
    %vm145 = vmor %vm143, %vm144
    %v146 = vsel %vm145, %v137, %v142
    %v147 = vrsqrt.pop %v136
    %v148 = vmul.f32 %v147, %v136
    %v149 = vmul.f32 %v148, %v147
    %v150 = vmul.f32 0.5, %v149
    %v151 = vsub.f32 1.5, %v150
    %v152 = vmul.f32 %v147, %v151
    %vm153 = vweird.f32 %v136
    %vm154 = vweird.f32 %v147
    %vm155 = vmor %vm153, %vm154
    %v156 = vsel %vm155, %v147, %v152
    %v157 = vmul.f32 %v133, %v146
    %v158 = vmul.f32 %v134, %v156
    %159 = vset.pattern.permute.xlu0 6
    %160 = vperm.xlu0 %159, %v43
    %v161 = vpop.permute.xlu0 %160
    %v163 = vsub.f32 %v54, %v161
    %v164 = vsub.f32 %v55, %v161
    %v165 = vmul.f32 %v163, %v163
    %v166 = vmul.f32 %v164, %v164
    %167 = vset.pattern.permute.xlu0 7
    %168 = vperm.xlu0 %167, %v43
    %v169 = vpop.permute.xlu0 %168
    %v171 = vsub.f32 %v65, %v169
    %v172 = vsub.f32 %v66, %v169
    %v173 = vmul.f32 %v171, %v171
    %v174 = vmul.f32 %v172, %v172
    %v175 = vadd.f32 %v165, %v173
    %v176 = vadd.f32 %v166, %v174
    %v177 = vadd.f32 %v175, 1e-30
    %v178 = vadd.f32 %v176, 1e-30
    %v179 = vrsqrt.pop %v177
    %v180 = vmul.f32 %v179, %v177
    %v181 = vmul.f32 %v180, %v179
    %v182 = vmul.f32 0.5, %v181
    %v183 = vsub.f32 1.5, %v182
    %v184 = vmul.f32 %v179, %v183
    %vm185 = vweird.f32 %v177
    %vm186 = vweird.f32 %v179
    %vm187 = vmor %vm185, %vm186
    %v188 = vsel %vm187, %v179, %v184
    %v189 = vrsqrt.pop %v178
    %v190 = vmul.f32 %v189, %v178
    %v191 = vmul.f32 %v190, %v189
    %v192 = vmul.f32 0.5, %v191
    %v193 = vsub.f32 1.5, %v192
    %v194 = vmul.f32 %v189, %v193
    %vm195 = vweird.f32 %v178
    %vm196 = vweird.f32 %v189
    %vm197 = vmor %vm195, %vm196
    %v198 = vsel %vm197, %v189, %v194
    %v199 = vmul.f32 %v175, %v188
    %v200 = vmul.f32 %v176, %v198
    %201 = vrot.lane.b32.xlu0 %v43, 126
    %v202 = vpop.permute.xlu0 %201
    %v204 = vsub.f32 %v43, %v202
    %v205 = vmul.f32 %v204, %v204
    %207 = vrot.lane.b32.xlu0 %v205, 127
    %v208 = vpop.permute.xlu0 %207
    %v210 = vadd.f32 %v205, %v208
    %v211 = vadd.f32 %v210, 1e-30
    %v212 = vrsqrt.pop %v211
    %v213 = vmul.f32 %v212, %v211
    %v214 = vmul.f32 %v213, %v212
    %v215 = vmul.f32 0.5, %v214
    %v216 = vsub.f32 1.5, %v215
    %v217 = vmul.f32 %v212, %v216
    %vm218 = vweird.f32 %v211
    %vm219 = vweird.f32 %v212
    %vm220 = vmor %vm218, %vm219
    %v221 = vsel %vm220, %v212, %v217
    %v222 = vmul.f32 %v210, %v221
    %223 = vrot.lane.b32.xlu0 %v43, 124
    %v224 = vpop.permute.xlu0 %223
    %v226 = vsub.f32 %v43, %v224
    %v227 = vmul.f32 %v226, %v226
    %229 = vrot.lane.b32.xlu0 %v227, 127
    %v230 = vpop.permute.xlu0 %229
    %v232 = vadd.f32 %v227, %v230
    %v233 = vadd.f32 %v232, 1e-30
    %v234 = vrsqrt.pop %v233
    %v235 = vmul.f32 %v234, %v233
    %v236 = vmul.f32 %v235, %v234
    %v237 = vmul.f32 0.5, %v236
    %v238 = vsub.f32 1.5, %v237
    %v239 = vmul.f32 %v234, %v238
    %vm240 = vweird.f32 %v233
    %vm241 = vweird.f32 %v234
    %vm242 = vmor %vm240, %vm241
    %v243 = vsel %vm242, %v234, %v239
    %v244 = vmul.f32 %v232, %v243
    %v245 = vsub.f32 %v157, %v199
    %v246 = vsub.f32 %v158, %v200
    %v247 = vsub.f32 %v222, %v244
    %249 = vset.pattern.permute.xlu0 2
    %250 = vperm.xlu0 %249, %v247
    %v251 = vpop.permute.xlu0 %250
    %v253 = vsub.f32 %v245, %v251
    %v254 = vsub.f32 %v246, %v251
    %v255 = vand.u32 2147483647, %v253
    %v256 = vand.u32 2147483647, %v254
    %v257 = vmul.f32 %v255, -1.0
    %v258 = vmul.f32 %v256, -1.0
    %v259 = vmul.f32 %v257, 1.442695
    %v260 = vpow.pop %v259
    %v261 = vmul.f32 %v258, 1.442695
    %v262 = vpow.pop %v261
    %v263 = vmul.f32 %v260, 0.5
    %v264 = vmul.f32 %v262, 0.5
    %v265 = vadd.f32 %v115, %v263
    %v266 = vadd.f32 %v116, %v264
    %v267 = vmax.f32 %v265, %v266
    %268 = vmax.xlane.f32.xlu0 %v267
    %v269 = vpop.xlane.xlu0 %268
    %v270 = vmin.f32 %v265, %v266
    %271 = vmin.xlane.f32.xlu0 %v270
    %v272 = vpop.xlane.xlu0 %271
    %v273 = vsub.f32 %v269, %v272
    %v274 = vadd.f32 %v273, 1e-12
    %v275 = vrcp.pop %v274
    %v276 = vmul.f32 %v274, %v275
    %v277 = vsub.f32 2.0, %v276
    %v278 = vmul.f32 %v275, %v277
    %v279 = vsub.f32 %v265, %v272
    %v280 = vsub.f32 %v266, %v272
    %v281 = vmul.f32 %v279, %v278
    %v282 = vmul.f32 %v280, %v278
    %283 = vst [vmem:[#allocation7] sm:$0xff] %v281
    %284 = vst [vmem:[#allocation7 + $0x8] sm:$0xff] %v282
    // Predicated region
    $region18: #{tpu_custom_call.1} parent=1 // pred_check
      _
    $region19: #{tpu_custom_call.1} parent=1 // pred_check_branch
      %286 = sbr.rel (0) target = $region21
    $region20: #{tpu_custom_call.1} parent=1 // pred_region
      %288 = vsyncadd [#allocation4], 0
      %s290 = sshll.u32 [#allocation7], 4
      %s291 = int_to_ptr.vmem [resolvable:$true] %s290
      %s292 = sshll.u32 %s2, 4
      %s293 = int_to_ptr.hbm [resolvable:$true] %s292
      %295 = dma.vmem_to_hbm [thread:$0]  %s291, 256, %s293, [#allocation4]
    $region21: #{tpu_custom_call.1} parent=1 // pred_fallthru
      _
    // Predicated region
    $region22: #{tpu_custom_call.1} parent=1 // pred_check
      _
    $region23: #{tpu_custom_call.1} parent=1 // pred_check_branch
      %297 = sbr.rel (0) target = $region25
    $region24: #{tpu_custom_call.1} parent=1 // pred_region
      %299 = dma.done [#allocation4], 256
    $region25: #{tpu_custom_call.1} parent=1 // pred_fallthru
      _
    %300 = vsyncpa [#allocation3], 1
    %301 = vsyncpa [#allocation6], 1
    %302 = vsyncpa [#allocation4], 1

</llo_original>
